<compile_context>
chip_gen: v6e
topology: v6e:2x2x1
jax: 0.10.0
libtpu: 0.0.40
codegen_flags: <defaults>
</compile_context>

<pallas_src>
import functools
from itertools import combinations

import jax
import jax.numpy as jnp
from jax.experimental import pallas as pl
from jax.experimental.pallas import tpu as pltpu


def _group_kernel(xr_ref, xc_ref, o_ref, *, n_valid, tm, inv_t, loss_scale):
    """One row block of G same-size SimCLR 'forward2' terms.

    xr_ref : VMEM f32 [G, TM, D]  -- anchor rows of this row block
    xc_ref : VMEM f32 [G, N,  D]  -- full contrast set (resident across blocks)
    o_ref  : VMEM f32 [8, 128]    -- per-term losses (row 0, cols 0..G-1),
                                     accumulated across row blocks
    """
    r = pl.program_id(0)
    g_count = xr_ref.shape[0]
    n_pad = xc_ref.shape[1]

    @pl.when(r == 0)
    def _init():
        o_ref[...] = jnp.zeros_like(o_ref)

    xr = xr_ref[...]                                            # [G, TM, D]
    xc = xc_ref[...]                                            # [G, N,  D]

    # Pairwise L2 distances of this row block vs. the full set via the Gram
    # matrix (f32 MXU operands, f32 accumulation; zero-padded feature columns
    # contribute nothing).
    sq_r = jnp.sum(xr * xr, axis=-1, keepdims=True)             # [G, TM, 1]
    sq_c = jnp.sum(xc * xc, axis=-1)[:, None, :]                # [G, 1,  N]
    gram = jnp.einsum('gmd,gnd->gmn', xr, xc,
                      preferred_element_type=jnp.float32)       # [G, TM, N]
    dist = jnp.sqrt(jnp.maximum(sq_r + sq_c - 2.0 * gram, 0.0))

    # t = d / T with d = 1/(1+dist) in (0, 1].  The reference's detached
    # row-max shift is a per-row constant that cancels exactly in log_prob,
    # and t <= 1/T = 10 keeps exp() safely bounded, so it is folded away.
    t = pl.reciprocal(1.0 + dist, approx=True) * inv_t          # [G, TM, N]

    # Single boolean mask: off-diagonal AND un-padded contrast column.
    rows = r * tm + jax.lax.broadcasted_iota(jnp.int32, (1, tm, n_pad), 1)
    cols = jax.lax.broadcasted_iota(jnp.int32, (1, tm, n_pad), 2)
    mask = (rows != cols) & (cols < n_valid)                    # [1, TM, N]

    s_pos = jnp.sum(jnp.where(mask, t, 0.0), axis=-1, keepdims=True)
    denom = jnp.sum(jnp.where(mask, jnp.exp(t), 0.0), axis=-1, keepdims=True)

    # On this module's code path the supervised mask degenerates to 1 - I, so
    # the positives count is exactly n_valid - 1.
    mlp = s_pos * (1.0 / (n_valid - 1.0)) - jnp.log(denom)      # [G, TM, 1]
    row_loss = loss_scale * mlp                                 # [G, TM, 1]

    # Per-term partial sums of this row block -> lane-dense (8,128) tile,
    # accumulated across row blocks.
    row_ok = (r * tm
              + jax.lax.broadcasted_iota(jnp.int32, (tm, 1), 0)) < n_valid
    r8 = jax.lax.broadcasted_iota(jnp.int32, (8, 128), 0)
    c128 = jax.lax.broadcasted_iota(jnp.int32, (8, 128), 1)
    contrib = jnp.zeros((8, 128), jnp.float32)
    for g in range(g_count):                                    # static unroll
        part_g = jnp.sum(jnp.where(row_ok, row_loss[g], 0.0)) * (1.0 / n_valid)
        contrib = jnp.where((r8 == 0) & (c128 == g), part_g, contrib)
    o_ref[...] += contrib


def _round_up(v, m):
    return ((v + m - 1) // m) * m


_TM_MAX = 256   # row-block size at large N (keeps [G, TM, N] temporaries small)


def _simclr_losses_one_group(xs, temperature, base_temperature):
    """All same-row-count SimCLR 'forward2' terms in ONE pallas_call.

    xs : list of [n, d_i] arrays that all share the same row count n.
    Returns a [len(xs)] f32 vector of per-term scalar losses.
    """
    g_count = len(xs)
    n = int(xs[0].shape[0])
    assert all(int(x.shape[0]) == n for x in xs)
    assert n >= 2, "SimCLR loss needs at least 2 samples per term"
    assert g_count <= 128

    d_pad = max(128, _round_up(max(int(x.shape[1]) for x in xs), 128))
    if n <= _TM_MAX:
        tm = _round_up(n, 8)      # f32 sublane tile; single row block
        n_pad = tm
    else:
        tm = _TM_MAX
        n_pad = _round_up(n, tm)
    num_blocks = n_pad // tm

    # TODO(synk): this per-call pad+stack is an extra HBM round trip over the
    # features; pre-stack once per training step if the feature slabs get big.
    x_all = jnp.stack([
        jnp.pad(x.astype(jnp.float32),
                ((0, n_pad - x.shape[0]), (0, d_pad - x.shape[1])))
        for x in xs])                                           # [G, Npad, Dpad]

    kernel = functools.partial(
        _group_kernel,
        n_valid=n, tm=tm,
        inv_t=float(1.0 / temperature),
        loss_scale=float(-(temperature / base_temperature)))

    out = pl.pallas_call(
        kernel,
        out_shape=jax.ShapeDtypeStruct((8, 128), jnp.float32),
        grid_spec=pltpu.PrefetchScalarGridSpec(
            num_scalar_prefetch=0,
            grid=(num_blocks,),
            in_specs=[
                pl.BlockSpec((g_count, tm, d_pad), lambda r: (0, r, 0)),
                pl.BlockSpec((g_count, n_pad, d_pad), lambda r: (0, 0, 0)),
            ],
            out_specs=pl.BlockSpec((8, 128), lambda r: (0, 0)),
        ),
        compiler_params=pltpu.CompilerParams(
            # Row-block axis accumulates per-term losses -> "arbitrary".
            dimension_semantics=("arbitrary",),
            vmem_limit_bytes=48 * 1024 * 1024),
        cost_estimate=pl.CostEstimate(
            flops=g_count * (2 * n_pad * n_pad * d_pad + 12 * n_pad * n_pad),
            transcendentals=g_count * 3 * n_pad * n_pad,
            bytes_accessed=2 * int(x_all.size) * 4 + 8 * 128 * 4),
    )(x_all, x_all)

    return out[0, :g_count]


def _simclr_losses(problems, temperature=0.1, base_temperature=0.1):
    """Per-term SimCLR 'forward2' losses.  Terms are grouped by row count so
    each group runs at its own N (one pallas_call per distinct size)."""
    groups = {}
    for idx, x in enumerate(problems):
        groups.setdefault(int(x.shape[0]), []).append(idx)
    losses = [None] * len(problems)
    for _, idxs in sorted(groups.items()):
        vals = _simclr_losses_one_group([problems[i] for i in idxs],
                                        temperature, base_temperature)
        for slot, i in enumerate(idxs):
            losses[i] = vals[slot]
    return jnp.stack(losses)


def simclr_flat_loss(x, temperature=0.1, base_temperature=0.1):
    """Scalar SimCLR loss of one [N, D] feature matrix (SimCLRLoss.forward2)."""
    return _simclr_losses([x], temperature, base_temperature)[0]


def pm_simclr_forward(x_man, x_tan, label, manifold_names,
                      temperature=0.1, base_temperature=0.1):
    """Equivalent of PMSimCLR.forward(x_man, x_tan, label, manifolds)."""
    # TODO(synk): the non-Euclidean branch of ManifoldSimCLRLoss (geoopt
    # mobius_add / artan_k hyperbolic distance) has no Pallas equivalent here;
    # only the 'Euclidean' manifold path is implemented.
    for name in manifold_names:
        assert name == 'Euclidean', "only Euclidean manifolds supported"
    assert label.shape[0] == x_man[0].shape[0]
    del label  # contents are unused on the reference's working code path

    n_man = len(manifold_names)
    problems, weights = [], []
    if n_man > 1:
        for i in range(n_man):
            problems.append(x_man[i])
            weights.append(1.0)
        # cross-manifold pairs (CrossManifoldSimCLRLoss), weighted 0.1 overall
        for a, b in combinations(range(len(x_tan)), 2):
            r1, r2 = x_tan[a], x_tan[b]
            dmax = max(r1.shape[1], r2.shape[1])
            r1 = jnp.pad(r1, ((0, 0), (0, dmax - r1.shape[1])))
            r2 = jnp.pad(r2, ((0, 0), (0, dmax - r2.shape[1])))
            problems.append(jnp.concatenate([r1, r2], axis=0))   # torch.vstack
            weights.append(0.1)
    else:
        problems.append(x_man[0])
        weights.append(1.0)

    per_term = _simclr_losses(problems, temperature, base_temperature)
    return jnp.sum(per_term * jnp.asarray(weights, jnp.float32))


def _flat_loss_ref(x, temperature=0.1, base_temperature=0.1):
    """Pure-JAX reference mirroring the PyTorch forward2 semantics (f32)."""
    n = x.shape[0]
    diff = x[None, :, :] - x[:, None, :]
    dist = jnp.linalg.norm(diff, axis=-1)
    d = 1.0 / (1.0 + dist)
    logits = d / temperature
    logits = logits - jnp.max(logits, axis=1, keepdims=True)
    offdiag = 1.0 - jnp.eye(n, dtype=jnp.float32)
    exp_logits = jnp.exp(logits) * offdiag
    log_prob = logits - jnp.log(jnp.sum(exp_logits, axis=1, keepdims=True))
    mlp = jnp.sum(offdiag * log_prob, axis=1) / (n - 1.0)
    return jnp.mean(-(temperature / base_temperature) * mlp)


if __name__ == "__main__":
    key = jax.random.PRNGKey(0)
    k1, k2, k3, k4 = jax.random.split(key, 4)
    bsz = 8
    x_man = [jax.random.normal(k1, (bsz, 32), jnp.float32),
             jax.random.normal(k2, (bsz, 32), jnp.float32)]
    x_tan = [jax.random.normal(k3, (bsz, 32), jnp.float32),
             jax.random.normal(k4, (bsz, 16), jnp.float32)]  # width mismatch -> exercises padding
    label = jnp.array([0, 0, 1, 1, 2, 2, 3, 3], dtype=jnp.int32)
    manifold_names = ['Euclidean', 'Euclidean']

    loss = pm_simclr_forward(x_man, x_tan, label, manifold_names)
    jax.block_until_ready(loss)

    # Correctness check against a pure-f32 JAX reference of the same math.
    # (Kernel uses the EUP approximate reciprocal, hence the small tolerance.)
    ref = (_flat_loss_ref(x_man[0]) + _flat_loss_ref(x_man[1])
           + 0.1 * _flat_loss_ref(jnp.concatenate(
               [x_tan[0], jnp.pad(x_tan[1], ((0, 0), (0, 16)))], axis=0)))
    assert jnp.allclose(loss, ref, rtol=5e-3, atol=5e-3), (loss, ref)

    print("KERNEL_OK")
</pallas_src>

<mosaic_0001>
module attributes {stable_mosaic.version = 11 : i64} {
  func.func @_group_kernel(%arg0: i32, %arg1: memref<2x8x128xf32, #tpu.memory_space<vmem>>, %arg2: memref<2x8x128xf32, #tpu.memory_space<vmem>>, %arg3: memref<8x128xf32, #tpu.memory_space<vmem>>) attributes {dimension_semantics = [#tpu.dimension_semantics<arbitrary>], iteration_bounds = array<i64: 1>, scalar_prefetch = 0 : i64, scratch_operands = 0 : i64, tpu.core_type = #tpu.core_type<tc>, window_params = [{transform_indices = @transform_0, window_bounds = array<i64: 2, 8, 128>}, {pipeline_mode = #tpu.pipeline_mode<synchronous>, transform_indices = @transform_1, window_bounds = array<i64: 2, 8, 128>}, {pipeline_mode = #tpu.pipeline_mode<synchronous>, transform_indices = @transform_2, window_bounds = array<i64: 8, 128>}]} {
    %c0_i32 = arith.constant 0 : i32
    %0 = arith.cmpi eq, %arg0, %c0_i32 : i32
    %1 = arith.extui %0 : i1 to i32
    %c0_i32_0 = arith.constant 0 : i32
    %2 = arith.cmpi ne, %1, %c0_i32_0 : i32
    scf.if %2 {
      %cst_35 = arith.constant 0.000000e+00 : f32
      %98 = vector.broadcast %cst_35 : f32 to vector<8x128xf32>
      %c0_36 = arith.constant 0 : index
      %c0_37 = arith.constant 0 : index
      %99 = vector.load %arg3[%c0_36, %c0_37] : memref<8x128xf32, #tpu.memory_space<vmem>>, vector<8x128xf32>
      tpu.vector_store %arg3[%c0_36, %c0_37], %98 {strides = array<i32>} : memref<8x128xf32, #tpu.memory_space<vmem>>, vector<8x128xf32>,
    } else {
    }
    %c0 = arith.constant 0 : index
    %c0_1 = arith.constant 0 : index
    %c0_2 = arith.constant 0 : index
    %3 = vector.load %arg1[%c0, %c0_1, %c0_2] : memref<2x8x128xf32, #tpu.memory_space<vmem>>, vector<2x8x128xf32>
    %c0_3 = arith.constant 0 : index
    %c0_4 = arith.constant 0 : index
    %c0_5 = arith.constant 0 : index
    %4 = vector.load %arg2[%c0_3, %c0_4, %c0_5] : memref<2x8x128xf32, #tpu.memory_space<vmem>>, vector<2x8x128xf32>
    %5 = arith.mulf %3, %3 : vector<2x8x128xf32>
    %cst = arith.constant dense<0.000000e+00> : vector<2x8xf32>
    %6 = vector.multi_reduction <add>, %5, %cst [2] : vector<2x8x128xf32> to vector<2x8xf32>
    %7 = vector.shape_cast %6 : vector<2x8xf32> to vector<2x8x1xf32>
    %8 = arith.mulf %4, %4 : vector<2x8x128xf32>
    %cst_6 = arith.constant dense<0.000000e+00> : vector<2x8xf32>
    %9 = vector.multi_reduction <add>, %8, %cst_6 [2] : vector<2x8x128xf32> to vector<2x8xf32>
    %10 = vector.shape_cast %9 : vector<2x8xf32> to vector<2x1x8xf32>
    "tpu.trace_start"() <{level = 10 : i32, message = "gmd,gnd->gmn"}> : () -> ()
    %cst_7 = arith.constant dense<0.000000e+00> : vector<2x8x8xf32>
    %11 = tpu.matmul %3, %4, %cst_7 {dimension_numbers = #tpu.dot_dimension_numbers<[2], [2], [1], [1], [0, 0, 0, 1, 1, 1], [0], [0]>} : vector<2x8x128xf32>, vector<2x8x128xf32>, vector<2x8x8xf32> -> vector<2x8x8xf32>
    "tpu.trace_stop"() : () -> ()
    %12 = vector.broadcast %7 : vector<2x8x1xf32> to vector<2x8x8xf32>
    %13 = vector.broadcast %10 : vector<2x1x8xf32> to vector<2x8x8xf32>
    %14 = arith.addf %12, %13 : vector<2x8x8xf32>
    %cst_8 = arith.constant 2.000000e+00 : f32
    %15 = vector.broadcast %cst_8 : f32 to vector<2x8x8xf32>
    %16 = arith.mulf %15, %11 : vector<2x8x8xf32>
    %17 = arith.subf %14, %16 : vector<2x8x8xf32>
    %cst_9 = arith.constant 0.000000e+00 : f32
    %18 = vector.broadcast %cst_9 : f32 to vector<2x8x8xf32>
    %19 = arith.maximumf %17, %18 : vector<2x8x8xf32>
    %20 = math.sqrt %19 : vector<2x8x8xf32>
    %cst_10 = arith.constant 1.000000e+00 : f32
    %21 = vector.broadcast %cst_10 : f32 to vector<2x8x8xf32>
    %22 = arith.addf %21, %20 : vector<2x8x8xf32>
    %23 = tpu.reciprocal %22 {approx = true} : vector<2x8x8xf32> -> vector<2x8x8xf32>
    %cst_11 = arith.constant 1.000000e+01 : f32
    %24 = vector.broadcast %cst_11 : f32 to vector<2x8x8xf32>
    %25 = arith.mulf %23, %24 : vector<2x8x8xf32>
    %c8_i32 = arith.constant 8 : i32
    %26 = arith.muli %arg0, %c8_i32 : i32
    %27 = tpu.iota {dimensions = array<i32: 1>} : vector<1x8x8xi32>
    %28 = vector.broadcast %26 : i32 to vector<1x8x8xi32>
    %29 = arith.addi %28, %27 : vector<1x8x8xi32>
    %30 = tpu.iota {dimensions = array<i32: 2>} : vector<1x8x8xi32>
    %31 = arith.cmpi ne, %29, %30 : vector<1x8x8xi32>
    %c8_i32_12 = arith.constant 8 : i32
    %32 = vector.broadcast %c8_i32_12 : i32 to vector<1x8x8xi32>
    %33 = arith.cmpi slt, %30, %32 : vector<1x8x8xi32>
    %34 = arith.andi %31, %33 : vector<1x8x8xi1>
    %cst_13 = arith.constant 0.000000e+00 : f32
    %35 = vector.shape_cast %34 : vector<1x8x8xi1> to vector<1x8x8xi1>
    %36 = vector.broadcast %35 : vector<1x8x8xi1> to vector<2x8x8xi1>
    %37 = vector.broadcast %cst_13 : f32 to vector<2x8x8xf32>
    %38 = arith.select %36, %25, %37 : vector<2x8x8xi1>, vector<2x8x8xf32>
    %cst_14 = arith.constant dense<0.000000e+00> : vector<2x8xf32>
    %39 = vector.multi_reduction <add>, %38, %cst_14 [2] : vector<2x8x8xf32> to vector<2x8xf32>
    %40 = vector.shape_cast %39 : vector<2x8xf32> to vector<2x8x1xf32>
    %41 = math.exp %25 : vector<2x8x8xf32>
    %cst_15 = arith.constant 0.000000e+00 : f32
    %42 = vector.shape_cast %34 : vector<1x8x8xi1> to vector<1x8x8xi1>
    %43 = vector.broadcast %42 : vector<1x8x8xi1> to vector<2x8x8xi1>
    %44 = vector.broadcast %cst_15 : f32 to vector<2x8x8xf32>
    %45 = arith.select %43, %41, %44 : vector<2x8x8xi1>, vector<2x8x8xf32>
    %cst_16 = arith.constant dense<0.000000e+00> : vector<2x8xf32>
    %46 = vector.multi_reduction <add>, %45, %cst_16 [2] : vector<2x8x8xf32> to vector<2x8xf32>
    %47 = vector.shape_cast %46 : vector<2x8xf32> to vector<2x8x1xf32>
    %cst_17 = arith.constant 0.142857149 : f32
    %48 = vector.broadcast %cst_17 : f32 to vector<2x8x1xf32>
    %49 = arith.mulf %40, %48 : vector<2x8x1xf32>
    %50 = math.log %47 : vector<2x8x1xf32>
    %51 = arith.subf %49, %50 : vector<2x8x1xf32>
    %cst_18 = arith.constant -1.000000e+00 : f32
    %52 = vector.broadcast %cst_18 : f32 to vector<2x8x1xf32>
    %53 = arith.mulf %52, %51 : vector<2x8x1xf32>
    %c8_i32_19 = arith.constant 8 : i32
    %54 = arith.muli %arg0, %c8_i32_19 : i32
    %55 = tpu.iota {dimensions = array<i32: 0>} : vector<8x1xi32>
    %56 = vector.broadcast %54 : i32 to vector<8x1xi32>
    %57 = arith.addi %56, %55 : vector<8x1xi32>
    %c8_i32_20 = arith.constant 8 : i32
    %58 = vector.broadcast %c8_i32_20 : i32 to vector<8x1xi32>
    %59 = arith.cmpi slt, %57, %58 : vector<8x1xi32>
    %60 = tpu.iota {dimensions = array<i32: 0>} : vector<8x128xi32>
    %61 = tpu.iota {dimensions = array<i32: 1>} : vector<8x128xi32>
    %cst_21 = arith.constant 0.000000e+00 : f32
    %62 = vector.broadcast %cst_21 : f32 to vector<8x128xf32>
    %63 = vector.extract_strided_slice %53 {offsets = [0, 0, 0], sizes = [1, 8, 1], strides = [1, 1, 1]} : vector<2x8x1xf32> to vector<1x8x1xf32>
    %64 = vector.shape_cast %63 : vector<1x8x1xf32> to vector<8x1xf32>
    %cst_22 = arith.constant 0.000000e+00 : f32
    %65 = vector.broadcast %cst_22 : f32 to vector<8x1xf32>
    %66 = arith.select %59, %64, %65 : vector<8x1xi1>, vector<8x1xf32>
    %67 = vector.shape_cast %66 : vector<8x1xf32> to vector<1x8x1xf32>
    %cst_23 = arith.constant dense<0.000000e+00> : vector<1xf32>
    %68 = vector.multi_reduction <add>, %67, %cst_23 [1, 2] : vector<1x8x1xf32> to vector<1xf32>
    %69 = vector.shape_cast %68 : vector<1xf32> to vector<1x1x1xf32>
    %70 = vector.extract %69[0, 0, 0] : f32 from vector<1x1x1xf32>
    %cst_24 = arith.constant 1.250000e-01 : f32
    %71 = arith.mulf %70, %cst_24 : f32
    %c0_i32_25 = arith.constant 0 : i32
    %72 = vector.broadcast %c0_i32_25 : i32 to vector<8x128xi32>
    %73 = arith.cmpi eq, %60, %72 : vector<8x128xi32>
    %c0_i32_26 = arith.constant 0 : i32
    %74 = vector.broadcast %c0_i32_26 : i32 to vector<8x128xi32>
    %75 = arith.cmpi eq, %61, %74 : vector<8x128xi32>
    %76 = arith.andi %73, %75 : vector<8x128xi1>
    %77 = vector.broadcast %71 : f32 to vector<8x128xf32>
    %78 = arith.select %76, %77, %62 : vector<8x128xi1>, vector<8x128xf32>
    %79 = vector.extract_strided_slice %53 {offsets = [1, 0, 0], sizes = [1, 8, 1], strides = [1, 1, 1]} : vector<2x8x1xf32> to vector<1x8x1xf32>
    %80 = vector.shape_cast %79 : vector<1x8x1xf32> to vector<8x1xf32>
    %cst_27 = arith.constant 0.000000e+00 : f32
    %81 = vector.broadcast %cst_27 : f32 to vector<8x1xf32>
    %82 = arith.select %59, %80, %81 : vector<8x1xi1>, vector<8x1xf32>
    %83 = vector.shape_cast %82 : vector<8x1xf32> to vector<1x8x1xf32>
    %cst_28 = arith.constant dense<0.000000e+00> : vector<1xf32>
    %84 = vector.multi_reduction <add>, %83, %cst_28 [1, 2] : vector<1x8x1xf32> to vector<1xf32>
    %85 = vector.shape_cast %84 : vector<1xf32> to vector<1x1x1xf32>
    %86 = vector.extract %85[0, 0, 0] : f32 from vector<1x1x1xf32>
    %cst_29 = arith.constant 1.250000e-01 : f32
    %87 = arith.mulf %86, %cst_29 : f32
    %c0_i32_30 = arith.constant 0 : i32
    %88 = vector.broadcast %c0_i32_30 : i32 to vector<8x128xi32>
    %89 = arith.cmpi eq, %60, %88 : vector<8x128xi32>
    %c1_i32 = arith.constant 1 : i32
    %90 = vector.broadcast %c1_i32 : i32 to vector<8x128xi32>
    %91 = arith.cmpi eq, %61, %90 : vector<8x128xi32>
    %92 = arith.andi %89, %91 : vector<8x128xi1>
    %93 = vector.broadcast %87 : f32 to vector<8x128xf32>
    %94 = arith.select %92, %93, %78 : vector<8x128xi1>, vector<8x128xf32>
    %c0_31 = arith.constant 0 : index
    %c0_32 = arith.constant 0 : index
    %95 = vector.load %arg3[%c0_31, %c0_32] : memref<8x128xf32, #tpu.memory_space<vmem>>, vector<8x128xf32>
    %96 = arith.addf %95, %94 : vector<8x128xf32>
    %c0_33 = arith.constant 0 : index
    %c0_34 = arith.constant 0 : index
    %97 = vector.load %arg3[%c0_33, %c0_34] : memref<8x128xf32, #tpu.memory_space<vmem>>, vector<8x128xf32>
    tpu.vector_store %arg3[%c0_33, %c0_34], %96 {strides = array<i32>} : memref<8x128xf32, #tpu.memory_space<vmem>>, vector<8x128xf32>,
    return
  }
  func.func @transform_0(%arg0: i32) -> (i32, i32, i32) {
    %c0_i32 = arith.constant 0 : i32
    %c0_i32_0 = arith.constant 0 : i32
    %c0_i32_1 = arith.constant 0 : i32
    return %c0_i32, %arg0, %c0_i32_0 : i32, i32, i32
  }
  func.func @transform_1(%arg0: i32) -> (i32, i32, i32) {
    %c0_i32 = arith.constant 0 : i32
    %c0_i32_0 = arith.constant 0 : i32
    %c0_i32_1 = arith.constant 0 : i32
    %c0_i32_2 = arith.constant 0 : i32
    return %c0_i32, %c0_i32_0, %c0_i32_1 : i32, i32, i32
  }
  func.func @transform_2(%arg0: i32) -> (i32, i32) {
    %c0_i32 = arith.constant 0 : i32
    %c0_i32_0 = arith.constant 0 : i32
    %c0_i32_1 = arith.constant 0 : i32
    return %c0_i32, %c0_i32_0 : i32, i32
  }
}

</mosaic_0001>

<llo_original>
// kernel: tpu_custom_call.1
$region0: #{tpu_custom_call.1}
  #allocation0 [shape = 'u32[]', space=smem, size = 0x4, offset = 0x4, fixed_abs, tag = 'smem constant byte address 0x4 - core index']
  #allocation1 [shape = 'u32[144,128]{1,0:T(1,128)}', space=vmem, size = 0x12000, scoped, tag = 'internal scratch']
  %s0 = inlined_call_operand.hbm [shape: f32[2,8,128], index: 0, kind: input, shape index: {}]
  %s1 = inlined_call_operand.hbm [shape: f32[2,8,128], index: 1, kind: input, shape index: {}]
  %s2 = inlined_call_operand.hbm [shape: f32[8,128], index: 2, kind: output, shape index: {}]
  %s3 = sld [smem:[#allocation0]]
  $region30: #{tpu_custom_call.1} parent=0
    _
  %s5 = ssub.s32 1, %s3
  %s6 = scalar_select 0, %s5, %s3
  $region1: #{tpu_custom_call.1} parent=0
    #allocation2 [shape = 'u8[8192]{0}', space=vmem, size = 0x2000, scoped, tag = 'input window, operand 0, single buffered']
    #allocation3 [shape = 's32[1]{0}', space=sflag, size = 0x4, scoped, tag = 'scoped memory for tpu_custom_call.1']
    #allocation4 [shape = 's32[1]{0}', space=sflag, size = 0x4, scoped, tag = 'scoped memory for tpu_custom_call.1']
    #allocation5 [shape = 'u8[8192]{0}', space=vmem, size = 0x2000, scoped, tag = 'input window, operand 1, single buffered']
    #allocation6 [shape = 's32[1]{0}', space=sflag, size = 0x4, scoped, tag = 'scoped memory for tpu_custom_call.1']
    #allocation7 [shape = 'u8[4096]{0}', space=vmem, size = 0x1000, scoped, tag = 'output window, operand 0, single buffered']
    %7 = vsyncpa [#allocation3], 0
    %8 = vsyncpa [#allocation6], 0
    %9 = vsyncpa [#allocation4], 0
    // Predicated region
    $region2: #{tpu_custom_call.1} parent=1 // pred_check
      _
    $region3: #{tpu_custom_call.1} parent=1 // pred_check_branch
      %11 = sbr.rel (0) target = $region5
    $region4: #{tpu_custom_call.1} parent=1 // pred_region
      %s13 = ssub.s32 256, 256
      %14 = vsyncadd [#allocation3], %s13
      %s15 = sshll.u32 [#allocation2], 4
      %s16 = int_to_ptr.vmem [resolvable:$true] %s15
      %21 = dma.hbm_to_vmem [thread:$0]  %s0, 256, %s16, [#allocation3], 128, 128, 8
    $region5: #{tpu_custom_call.1} parent=1 // pred_fallthru
      _
    // Predicated region
    $region6: #{tpu_custom_call.1} parent=1 // pred_check
      _
    $region7: #{tpu_custom_call.1} parent=1 // pred_check_branch
      %23 = sbr.rel (0) target = $region9
    $region8: #{tpu_custom_call.1} parent=1 // pred_region
      %s25 = ssub.s32 256, 256
      %26 = vsyncadd [#allocation6], %s25
      %s27 = sshll.u32 [#allocation5], 4
      %s28 = int_to_ptr.vmem [resolvable:$true] %s27
      %33 = dma.hbm_to_vmem [thread:$0]  %s1, 256, %s28, [#allocation6], 128, 128, 8
    $region9: #{tpu_custom_call.1} parent=1 // pred_fallthru
      _
    // Predicated region
    $region10: #{tpu_custom_call.1} parent=1 // pred_check
      _
    $region11: #{tpu_custom_call.1} parent=1 // pred_check_branch
      %35 = sbr.rel (0) target = $region13
    $region12: #{tpu_custom_call.1} parent=1 // pred_region
      %36 = dma.done [#allocation3], 256
    $region13: #{tpu_custom_call.1} parent=1 // pred_fallthru
      _
    // Predicated region
    $region14: #{tpu_custom_call.1} parent=1 // pred_check
      _
    $region15: #{tpu_custom_call.1} parent=1 // pred_check_branch
      %38 = sbr.rel (0) target = $region17
    $region16: #{tpu_custom_call.1} parent=1 // pred_region
      %39 = dma.done [#allocation6], 256
    $region17: #{tpu_custom_call.1} parent=1 // pred_fallthru
      _
    %p40 = scmp.eq.s32.totalorder 0, 0
    // Predicated region
    $region18: #{tpu_custom_call.1} parent=1 // pred_check
      %p41 = pneg %p40
    $region19: #{tpu_custom_call.1} parent=1 // pred_check_branch
      %43 = sbr.rel (%p41) target = $region21
    $region20: #{tpu_custom_call.1} parent=1 // pred_region
      %44 = vst [vmem:[#allocation7] sm:$0xff] 0.0
    $region21: #{tpu_custom_call.1} parent=1 // pred_fallthru
      _
    %v45 = vld [vmem:[#allocation2] sm:$0xff]
    %v46 = vld [vmem:[#allocation2 + $0x8] sm:$0xff]
    %v47 = vld [vmem:[#allocation5] sm:$0xff]
    %v48 = vld [vmem:[#allocation5 + $0x8] sm:$0xff]
    %v49 = vmul.f32 %v45, %v45
    %v50 = vmul.f32 %v46, %v46
    %51 = vadd.xlane.f32.xlu0 %v49
    %v52 = vpop.xlane.xlu0 %51
    %53 = vadd.xlane.f32.xlu0 %v50
    %v54 = vpop.xlane.xlu0 %53
    %v55 = vmul.f32 %v47, %v47
    %v56 = vmul.f32 %v48, %v48
    %57 = vadd.xlane.f32.xlu0 %v55
    %v58 = vpop.xlane.xlu0 %57
    %59 = vadd.xlane.f32.xlu0 %v56
    %v60 = vpop.xlane.xlu0 %59
    %61 = vmatprep.subr.mxu0 0.0
    %62 = vmatpush1.xpose.msra.mxu0 0.0
    %63 = vmatprep.subr.mxu0 0.0
    %64 = vmatpush1.xpose.msra.mxu0 0.0
    %65 = vmatprep.subr.mxu0 0.0
    %66 = vmatpush1.xpose.msra.mxu0 0.0
    %67 = vmatprep.subr.mxu0 0.0
    %68 = vmatpush1.xpose.msra.mxu0 0.0
    %69 = vmatprep.subr.mxu0 0.0
    %70 = vmatpush1.xpose.msra.mxu0 0.0
    %71 = vmatprep.subr.mxu0 0.0
    %72 = vmatpush1.xpose.msra.mxu0 0.0
    %73 = vmatprep.subr.mxu0 0.0
    %74 = vmatpush1.xpose.msra.mxu0 0.0
    %75 = vmatprep.subr.mxu0 0.0
    %76 = vmatpush1.xpose.msra.mxu0 0.0
    %77 = vmatprep.subr.mxu0 0.0
    %78 = vmatpush1.xpose.msra.mxu0 0.0
    %79 = vmatprep.subr.mxu0 0.0
    %80 = vmatpush1.xpose.msra.mxu0 0.0
    %81 = vmatprep.subr.mxu0 0.0
    %82 = vmatpush1.xpose.msra.mxu0 0.0
    %83 = vmatprep.subr.mxu0 0.0
    %84 = vmatpush1.xpose.msra.mxu0 0.0
    %85 = vmatprep.subr.mxu0 0.0
    %86 = vmatpush1.xpose.msra.mxu0 0.0
    %87 = vmatprep.subr.mxu0 0.0
    %88 = vmatpush1.xpose.msra.mxu0 0.0
    %89 = vmatprep.subr.mxu0 0.0
    %90 = vmatpush1.xpose.msra.mxu0 0.0
    %91 = vmatprep.subr.mxu0 0.0
    %92 = vmatpush1.xpose.msra.mxu0 %v47
    %93 = vmatprep.subr.mxu0 0.0
    %94 = vmatpush2.xpose.msra.mxu0 0.0
    %95 = vmatprep.subr.mxu0 0.0
    %96 = vmatpush2.xpose.msra.mxu0 0.0
    %97 = vmatprep.subr.mxu0 0.0
    %98 = vmatpush2.xpose.msra.mxu0 0.0
    %99 = vmatprep.subr.mxu0 0.0
    %100 = vmatpush2.xpose.msra.mxu0 0.0
    %101 = vmatprep.subr.mxu0 0.0
    %102 = vmatpush2.xpose.msra.mxu0 0.0
    %103 = vmatprep.subr.mxu0 0.0
    %104 = vmatpush2.xpose.msra.mxu0 0.0
    %105 = vmatprep.subr.mxu0 0.0
    %106 = vmatpush2.xpose.msra.mxu0 0.0
    %107 = vmatprep.subr.mxu0 0.0
    %108 = vmatpush2.xpose.msra.mxu0 0.0
    %109 = vmatprep.subr.mxu0 0.0
    %110 = vmatpush2.xpose.msra.mxu0 0.0
    %111 = vmatprep.subr.mxu0 0.0
    %112 = vmatpush2.xpose.msra.mxu0 0.0
    %113 = vmatprep.subr.mxu0 0.0
    %114 = vmatpush2.xpose.msra.mxu0 0.0
    %115 = vmatprep.subr.mxu0 0.0
    %116 = vmatpush2.xpose.msra.mxu0 0.0
    %117 = vmatprep.subr.mxu0 0.0
    %118 = vmatpush2.xpose.msra.mxu0 0.0
    %119 = vmatprep.subr.mxu0 0.0
    %120 = vmatpush2.xpose.msra.mxu0 0.0
    %121 = vmatprep.subr.mxu0 0.0
    %122 = vmatpush2.xpose.msra.mxu0 0.0
    %123 = vmatprep.subr.mxu0 0.0
    %124 = vmatpush2.xpose.msra.mxu0 0.0
    %125 = vmatprep.mubr.f32.mxu0 0.0
    %126 = vmatmul.mubr.f32.gmra.mxu0 %v45
    %v127 = vpop.f32.mrf.mxu0
    %v128 = vadd.f32 0.0, %v127
    %v129 = vpop.f32.mrf.mxu0
    %130 = vdwg.mxu0
    %131 = vmatprep.subr.mxu0 0.0
    %132 = vmatpush1.xpose.msra.mxu0 0.0
    %133 = vmatprep.subr.mxu0 0.0
    %134 = vmatpush1.xpose.msra.mxu0 0.0
    %135 = vmatprep.subr.mxu0 0.0
    %136 = vmatpush1.xpose.msra.mxu0 0.0
    %137 = vmatprep.subr.mxu0 0.0
    %138 = vmatpush1.xpose.msra.mxu0 0.0
    %139 = vmatprep.subr.mxu0 0.0
    %140 = vmatpush1.xpose.msra.mxu0 0.0
    %141 = vmatprep.subr.mxu0 0.0
    %142 = vmatpush1.xpose.msra.mxu0 0.0
    %143 = vmatprep.subr.mxu0 0.0
    %144 = vmatpush1.xpose.msra.mxu0 0.0
    %145 = vmatprep.subr.mxu0 0.0
    %146 = vmatpush1.xpose.msra.mxu0 0.0
    %147 = vmatprep.subr.mxu0 0.0
    %148 = vmatpush1.xpose.msra.mxu0 0.0
    %149 = vmatprep.subr.mxu0 0.0
    %150 = vmatpush1.xpose.msra.mxu0 0.0
    %151 = vmatprep.subr.mxu0 0.0
    %152 = vmatpush1.xpose.msra.mxu0 0.0
    %153 = vmatprep.subr.mxu0 0.0
    %154 = vmatpush1.xpose.msra.mxu0 0.0
    %155 = vmatprep.subr.mxu0 0.0
    %156 = vmatpush1.xpose.msra.mxu0 0.0
    %157 = vmatprep.subr.mxu0 0.0
    %158 = vmatpush1.xpose.msra.mxu0 0.0
    %159 = vmatprep.subr.mxu0 0.0
    %160 = vmatpush1.xpose.msra.mxu0 0.0
    %161 = vmatprep.subr.mxu0 0.0
    %162 = vmatpush1.xpose.msra.mxu0 %v48
    %163 = vmatprep.subr.mxu0 0.0
    %164 = vmatpush2.xpose.msra.mxu0 0.0
    %165 = vmatprep.subr.mxu0 0.0
    %166 = vmatpush2.xpose.msra.mxu0 0.0
    %167 = vmatprep.subr.mxu0 0.0
    %168 = vmatpush2.xpose.msra.mxu0 0.0
    %169 = vmatprep.subr.mxu0 0.0
    %170 = vmatpush2.xpose.msra.mxu0 0.0
    %171 = vmatprep.subr.mxu0 0.0
    %172 = vmatpush2.xpose.msra.mxu0 0.0
    %173 = vmatprep.subr.mxu0 0.0
    %174 = vmatpush2.xpose.msra.mxu0 0.0
    %175 = vmatprep.subr.mxu0 0.0
    %176 = vmatpush2.xpose.msra.mxu0 0.0
    %177 = vmatprep.subr.mxu0 0.0
    %178 = vmatpush2.xpose.msra.mxu0 0.0
    %179 = vmatprep.subr.mxu0 0.0
    %180 = vmatpush2.xpose.msra.mxu0 0.0
    %181 = vmatprep.subr.mxu0 0.0
    %182 = vmatpush2.xpose.msra.mxu0 0.0
    %183 = vmatprep.subr.mxu0 0.0
    %184 = vmatpush2.xpose.msra.mxu0 0.0
    %185 = vmatprep.subr.mxu0 0.0
    %186 = vmatpush2.xpose.msra.mxu0 0.0
    %187 = vmatprep.subr.mxu0 0.0
    %188 = vmatpush2.xpose.msra.mxu0 0.0
    %189 = vmatprep.subr.mxu0 0.0
    %190 = vmatpush2.xpose.msra.mxu0 0.0
    %191 = vmatprep.subr.mxu0 0.0
    %192 = vmatpush2.xpose.msra.mxu0 0.0
    %193 = vmatprep.subr.mxu0 0.0
    %194 = vmatpush2.xpose.msra.mxu0 0.0
    %195 = vmatprep.mubr.f32.mxu0 0.0
    %196 = vmatmul.mubr.f32.gmra.mxu0 %v46
    %v197 = vpop.f32.mrf.mxu0
    %v198 = vadd.f32 0.0, %v197
    %v199 = vpop.f32.mrf.mxu0
    %200 = vdwg.mxu0
    %v203 = vlaneseq
    %v204 = vand.u32 %v203, 127
    %v205 = vlaneseq
    %v206 = vshrl.u32 %v205, 7
    %v207 = vsub.s32 %v204, %v206
    %v208 = vrot.slane %v58, %v207
    %v209 = vlaneseq
    %v210 = vshrl.u32 %v209, 7
    %v211 = vsub.s32 %v204, %v210
    %v212 = vrot.slane %v60, %v211
    %vm213 = vcmask 1042434
    %v214 = vsel %vm213, %v208, %v208
    %vm215 = vcmask 1043459
    %v216 = vsel %vm215, %v208, %v214
    %vm217 = vcmask 1044484
    %v218 = vsel %vm217, %v208, %v216
    %vm219 = vcmask 1045509
    %v220 = vsel %vm219, %v208, %v218
    %vm221 = vcmask 1046534
    %v222 = vsel %vm221, %v208, %v220
    %vm223 = vcmask 1047559
    %v224 = vsel %vm223, %v208, %v222
    %v225 = vsel %vm213, %v212, %v212
    %v226 = vsel %vm215, %v212, %v225
    %v227 = vsel %vm217, %v212, %v226
    %v228 = vsel %vm219, %v212, %v227
    %v229 = vsel %vm221, %v212, %v228
    %v230 = vsel %vm223, %v212, %v229
    %v233 = vadd.f32 %v52, %v224
    %v234 = vadd.f32 %v54, %v230
    %v235 = vmul.f32 %v128, 2.0
    %v236 = vmul.f32 %v198, 2.0
    %v237 = vsub.f32 %v233, %v235
    %v238 = vsub.f32 %v234, %v236
    %v239 = vmax.f32 %v237, 0.0
    %v240 = vmax.f32 %v238, 0.0
    %v241 = vrsqrt.pop %v239
    %v242 = vmul.f32 %v239, %v241
    %vm243 = vcmp.eq.f32.partialorder %v239, inf
    %v244 = vsel %vm243, %v239, %v242
    %vm245 = vcmp.eq.f32.partialorder %v239, 0.0
    %v246 = vand.u32 %v239, 2147483648
    %v247 = vsel %vm245, %v246, %v244
    %v248 = vrsqrt.pop %v240
    %v249 = vmul.f32 %v240, %v248
    %vm250 = vcmp.eq.f32.partialorder %v240, inf
    %v251 = vsel %vm250, %v240, %v249
    %vm252 = vcmp.eq.f32.partialorder %v240, 0.0
    %v253 = vand.u32 %v240, 2147483648
    %v254 = vsel %vm252, %v253, %v251
    %v255 = vadd.f32 %v247, 1.0
    %v256 = vadd.f32 %v254, 1.0
    %v257 = vrcp.pop %v255
    %v258 = vrcp.pop %v256
    %v259 = vmul.f32 %v257, 10.0
    %v260 = vmul.f32 %v258, 10.0
    %s261 = smul.u32 0, 8
    %v262 = vlaneseq
    %v263 = vshrl.u32 %v262, 7
    %v264 = vstv %s261
    %v265 = vadd.s32 %v264, %v263
    %vm266 = vcmp.ne.s32.totalorder %v265, %v204
    %vm267 = vcmp.lt.s32.totalorder %v204, 8
    %vm268 = vmand %vm266, %vm267
    %v269 = vsel %vm268, 1, 0
    %vm270 = vcmp.eq.s32.totalorder %v269, 1
    %v271 = vsel %vm270, %v259, 0.0
    %v272 = vsel %vm270, %v260, 0.0
    %vm273 = vcmask 64512
    %v274 = vsel %vm273, %v271, 0.0
    %275 = vadd.xlane.f32.xlu0 %v274
    %v276 = vpop.xlane.xlu0 %275
    %v277 = vsel %vm273, %v272, 0.0
    %278 = vadd.xlane.f32.xlu0 %v277
    %v279 = vpop.xlane.xlu0 %278
    %v280 = vmul.f32 %v259, 1.442695
    %v281 = vpow.pop %v280
    %v282 = vmul.f32 %v260, 1.442695
    %v283 = vpow.pop %v282
    %v284 = vsel %vm270, %v281, 0.0
    %v285 = vsel %vm270, %v283, 0.0
    %v286 = vsel %vm273, %v284, 0.0
    %287 = vadd.xlane.f32.xlu0 %v286
    %v288 = vpop.xlane.xlu0 %287
    %v289 = vsel %vm273, %v285, 0.0
    %290 = vadd.xlane.f32.xlu0 %v289
    %v291 = vpop.xlane.xlu0 %290
    %v292 = vmul.f32 %v276, 0.14285715
    %v293 = vmul.f32 %v279, 0.14285715
    %v294 = vlog2.pop %v288
    %v295 = vmul.f32 %v294, 0.6931472
    %v296 = vlog2.pop %v291
    %v297 = vmul.f32 %v296, 0.6931472
    %v298 = vsub.f32 %v292, %v295
    %v299 = vsub.f32 %v293, %v297
    %v300 = vmul.f32 %v298, -1.0
    %v301 = vmul.f32 %v299, -1.0
    %vm302 = vcmp.lt.s32.totalorder %v265, 8
    %v303 = vsel %vm302, %v300, 0.0
    %vm304 = vcmask 7168
    %v305 = vsel %vm304, %v303, 0.0
    %306 = vadd.xlane.f32.xlu0 %v305
    %v307 = vpop.xlane.xlu0 %306
    %v308 = vrot.slane %v307, 4
    %v309 = vadd.f32 %v307, %v308
    %v310 = vrot.slane %v309, 2
    %v311 = vadd.f32 %v309, %v310
    %v312 = vrot.slane %v311, 1
    %v313 = vadd.f32 %v311, %v312
    %s314 = vtos %v313
    %s315 = smul.f32 %s314, 0.125
    %vm316 = vcmp.eq.s32.totalorder %v263, 0
    %vm317 = vcmp.eq.s32.totalorder %v204, 0
    %vm318 = vmand %vm316, %vm317
    %v319 = vstv %s315
    %v320 = vsel %vm318, %v319, 0.0
    %v321 = vsel %vm302, %v301, 0.0
    %v322 = vsel %vm304, %v321, 0.0
    %323 = vadd.xlane.f32.xlu0 %v322
    %v324 = vpop.xlane.xlu0 %323
    %v325 = vrot.slane %v324, 4
    %v326 = vadd.f32 %v324, %v325
    %v327 = vrot.slane %v326, 2
    %v328 = vadd.f32 %v326, %v327
    %v329 = vrot.slane %v328, 1
    %v330 = vadd.f32 %v328, %v329
    %s331 = vtos %v330
    %s332 = smul.f32 %s331, 0.125
    %vm333 = vcmp.eq.s32.totalorder %v204, 1
    %vm334 = vmand %vm316, %vm333
    %v335 = vstv %s332
    %v336 = vsel %vm334, %v335, %v320
    %v337 = vld [vmem:[#allocation7] sm:$0xff]
    %v338 = vadd.f32 %v337, %v336
    %339 = vst [vmem:[#allocation7] sm:$0xff] %v338
    // Predicated region
    $region22: #{tpu_custom_call.1} parent=1 // pred_check
      _
    $region23: #{tpu_custom_call.1} parent=1 // pred_check_branch
      %341 = sbr.rel (0) target = $region25
    $region24: #{tpu_custom_call.1} parent=1 // pred_region
      %s343 = ssub.s32 128, 128
      %344 = vsyncadd [#allocation4], %s343
      %s346 = sshll.u32 [#allocation7], 4
      %s347 = int_to_ptr.vmem [resolvable:$true] %s346
      %349 = dma.vmem_to_hbm [thread:$0]  %s347, 128, %s2, [#allocation4]
    $region25: #{tpu_custom_call.1} parent=1 // pred_fallthru
      _
    // Predicated region
    $region26: #{tpu_custom_call.1} parent=1 // pred_check
      _
    $region27: #{tpu_custom_call.1} parent=1 // pred_check_branch
      %351 = sbr.rel (0) target = $region29
    $region28: #{tpu_custom_call.1} parent=1 // pred_region
      %352 = dma.done [#allocation4], 128
    $region29: #{tpu_custom_call.1} parent=1 // pred_fallthru
      _
    %353 = vsyncpa [#allocation3], 1
    %354 = vsyncpa [#allocation6], 1
    %355 = vsyncpa [#allocation4], 1

</llo_original>
